<compile_context>
chip_gen: v7x
topology: tpu7x:2x2x1
jax: 0.10.0
libtpu: 0.0.40
codegen_flags: <defaults>
</compile_context>

<pallas_src>
import functools

import jax
import jax.numpy as jnp
from jax.experimental import pallas as pl
from jax.experimental.pallas import tpu as pltpu


def _fc_gate(avg, w1t_ref, b1_ref, w2t_ref, b2_ref):
    """avg: (bt, C) f32 -> threshold (bt, C) f32 (eval-mode BN folded into fc1)."""
    h = jnp.dot(avg, w1t_ref[...], preferred_element_type=jnp.float32) + b1_ref[...]
    h = jnp.maximum(h, 0.0)
    h = jnp.dot(h, w2t_ref[...], preferred_element_type=jnp.float32) + b2_ref[...]
    return avg * jax.nn.sigmoid(h)                      # >= 0 always


def shrinkage_kernel_nchw(x_ref, w1t_ref, b1_ref, w2t_ref, b2_ref, o_ref, *,
                          stream_dtype):
    """General path: block = (b_tile, C, L), channels on sublanes (C >= 8)."""
    x = x_ref[...].astype(stream_dtype)                 # (bt, C, L), input dtype
    inv_len = 1.0 / x.shape[-1]
    # f32 accumulation for the reduction only; the big elementwise path below
    # stays in the streaming dtype.
    avg = jnp.sum(jnp.abs(x), axis=-1, dtype=jnp.float32) * inv_len   # (bt, C)
    t = _fc_gate(avg, w1t_ref, b1_ref, w2t_ref, b2_ref)
    t = t.astype(x.dtype)[:, :, None]                   # (bt, C, 1)
    o_ref[...] = (x - jnp.clip(x, -t, t)).astype(o_ref.dtype)


def shrinkage_kernel_packed(x_ref, w1t_ref, b1_ref, w2t_ref, b2_ref, o_ref, *,
                            channels, length, stream_dtype):
    """Sublane-packed path for C < 8: block = (b_tile, C*L), batch on sublanes."""
    x = x_ref[...].astype(stream_dtype)                 # (bt, C*L)
    bt = x.shape[0]
    # Per-channel mean of |x| via static lane slices (exact f32 accumulation;
    # avoids any in-kernel reshape of the tiled dims).
    cols = [jnp.sum(jnp.abs(x[:, c * length:(c + 1) * length]),
                    axis=-1, keepdims=True, dtype=jnp.float32)
            for c in range(channels)]
    avg = jnp.concatenate(cols, axis=-1) * (1.0 / length)              # (bt, C)
    t = _fc_gate(avg, w1t_ref, b1_ref, w2t_ref, b2_ref).astype(x.dtype)
    # Broadcast each channel's threshold across its length segment.
    t_wide = jnp.concatenate(
        [jnp.broadcast_to(t[:, c:c + 1], (bt, length)) for c in range(channels)],
        axis=-1)                                                        # (bt, C*L)
    o_ref[...] = (x - jnp.clip(x, -t_wide, t_wide)).astype(o_ref.dtype)


def _tpu_generation():
    try:
        kind = jax.devices()[0].device_kind.lower()
    except Exception:
        return 6
    for g in (7, 6, 5, 4):
        if f"v{g}" in kind or f"tpu{g}" in kind:
            return g
    return 6


def shrinkage(x, params, *, block_bytes_target=None):
    """x: (B, C, L).  params: dict of fc / BatchNorm parameters (see make_params)."""
    B, C, L = x.shape
    eps = 1e-5
    gen = _tpu_generation()

    # ---- generation-aware knobs -------------------------------------------
    if gen >= 7:              # v7x: 64 MiB physical VMEM, 2 TensorCores
        target = block_bytes_target or 4 * 1024 * 1024
        vmem_cap = 48 * 1024 * 1024
        num_cores = 2
    else:                     # v5e / v6e: 128 MiB physical VMEM, 1 TensorCore
        target = block_bytes_target or 8 * 1024 * 1024
        vmem_cap = 96 * 1024 * 1024
        num_cores = 1
    # v5e's VPU has no bf16: promote the streaming path to f32 there only.
    stream_dtype = jnp.float32 if (gen <= 5 and x.dtype != jnp.float32) else x.dtype
    elem_bytes = max(jnp.dtype(x.dtype).itemsize, jnp.dtype(stream_dtype).itemsize)
    per_batch = C * L * elem_bytes

    # ---- one-time parameter transforms (eval-mode BN folded into fc1) ------
    scale = params["gamma"] * jax.lax.rsqrt(params["running_var"] + eps)      # (C,)
    w1t = (params["w1"].T * scale[None, :]).astype(jnp.float32)               # (C, C)
    b1 = ((params["b1"] - params["running_mean"]) * scale
          + params["beta"]).reshape(1, C).astype(jnp.float32)
    w2t = params["w2"].T.astype(jnp.float32)
    b2 = params["b2"].reshape(1, C).astype(jnp.float32)

    # ---- batch tiling: cdiv, >= 2 grid steps per TensorCore when B allows ---
    min_steps = 2 * num_cores
    b_tile = max(1, min(B, target // max(1, per_batch)))
    desired = min(min_steps, B)
    if desired > 1:
        b_tile = min(b_tile, max(1, B // desired))

    # Sublane packing (C < 8): flatten to (B, C*L); the block's sublane dim must
    # then be a multiple of 8 or equal to B.
    use_packed = C < 8
    if use_packed:
        if b_tile >= B or B <= 8:
            bt_packed = B
        else:
            bt_packed = max(8, (b_tile // 8) * 8)
        if 7 * bt_packed * per_batch > vmem_cap:       # forced tile too big
            use_packed = False
        else:
            b_tile = bt_packed

    grid = (pl.cdiv(B, b_tile),)
    block_bytes = b_tile * per_batch
    param_bytes = 4 * (2 * C * C + 4 * C)
    # 2x double-buffered input + 2x output + ~3 block-sized temporaries.
    needed = 7 * block_bytes + 2 * param_bytes + 2 * 1024 * 1024
    # TODO(synk): if a single batch row (C*L slab) alone pushes `needed` past the
    #             cap, switch to an L-tiled two-pass (reduce-then-apply) structure
    #             instead of relying on a larger VMEM limit.
    vmem_limit = int(min(vmem_cap, max(needed, 24 * 1024 * 1024)))

    compiler_params = pltpu.CompilerParams(
        dimension_semantics=("parallel",),      # batch blocks are independent
        vmem_limit_bytes=vmem_limit,
    )
    # TODO(synk): on v5e consider pipeline_mode=pl.Buffered(3) on the x input if
    #             xprof shows exposed DMA (low priority; verify exposure first).

    def resident(shape):
        return pl.BlockSpec(shape, lambda i: (0,) * len(shape))

    if use_packed:
        # Lane axis = C*L (lane-dense whenever L % 128 == 0); sublane axis = batch.
        x2 = x.reshape(B, C * L)
        xio = pl.BlockSpec((b_tile, C * L), lambda i: (i, 0))
        kernel = functools.partial(shrinkage_kernel_packed, channels=C, length=L,
                                   stream_dtype=stream_dtype)
        out = pl.pallas_call(
            kernel,
            out_shape=jax.ShapeDtypeStruct((B, C * L), x.dtype),
            grid=grid,
            in_specs=[xio, resident((C, C)), resident((1, C)),
                      resident((C, C)), resident((1, C))],
            out_specs=xio,
            compiler_params=compiler_params,
        )(x2, w1t, b1, w2t, b2)
        return out.reshape(B, C, L)

    xio = pl.BlockSpec((b_tile, C, L), lambda i: (i, 0, 0))
    kernel = functools.partial(shrinkage_kernel_nchw, stream_dtype=stream_dtype)
    return pl.pallas_call(
        kernel,
        out_shape=jax.ShapeDtypeStruct((B, C, L), x.dtype),
        grid=grid,
        in_specs=[xio, resident((C, C)), resident((1, C)),
                  resident((C, C)), resident((1, C))],
        out_specs=xio,
        compiler_params=compiler_params,
    )(x, w1t, b1, w2t, b2)


def make_params(channel, key):
    """Deterministic synthetic parameters matching the PyTorch module shapes."""
    k1, k2, k3, k4 = jax.random.split(key, 4)
    bound = 1.0 / jnp.sqrt(channel)
    u = lambda k, shape: jax.random.uniform(k, shape, jnp.float32, -bound, bound)
    return {
        "w1": u(k1, (channel, channel)),
        "b1": u(k2, (channel,)),
        "gamma": jnp.ones((channel,), jnp.float32),
        "beta": jnp.zeros((channel,), jnp.float32),
        "running_mean": jnp.zeros((channel,), jnp.float32),
        "running_var": jnp.ones((channel,), jnp.float32),
        "w2": u(k3, (channel, channel)),
        "b2": u(k4, (channel,)),
    }


def shrinkage_reference(x, params, eps=1e-5):
    """Pure-JAX reference matching the PyTorch forward (eval-mode BN)."""
    x_abs = jnp.abs(x)
    avg = jnp.mean(x_abs, axis=-1)                                 # (B, C)
    h = avg @ params["w1"].T + params["b1"]
    h = (h - params["running_mean"]) * jax.lax.rsqrt(params["running_var"] + eps)
    h = h * params["gamma"] + params["beta"]
    h = jnp.maximum(h, 0.0)
    h = h @ params["w2"].T + params["b2"]
    s = jax.nn.sigmoid(h)
    thresh = (avg * s)[:, :, None]
    return jnp.sign(x) * jnp.maximum(x_abs - thresh, 0.0)


if __name__ == "__main__":
    key = jax.random.PRNGKey(0)
    # Case 1 (C < 8): exercises the sublane-packed (B, C*L) path.
    # Case 2 (C >= 8): exercises the general (b_tile, C, L) path.
    for (B, C, L) in [(2, 4, 16), (2, 8, 128)]:
        key, kx, kp = jax.random.split(key, 3)
        x = jax.random.normal(kx, (B, C, L), dtype=jnp.float32)
        params = make_params(C, kp)

        out = shrinkage(x, params)
        jax.block_until_ready(out)

        ref = shrinkage_reference(x, params)
        assert out.shape == (B, C, L) and out.dtype == x.dtype
        assert jnp.allclose(out, ref, rtol=1e-3, atol=1e-3), (
            (B, C, L), float(jnp.max(jnp.abs(out - ref))))
    print("KERNEL_OK")
</pallas_src>

<mosaic_0001>
module attributes {stable_mosaic.version = 11 : i64} {
  func.func @shrinkage_kernel_packed(%arg0: i32, %arg1: memref<2x64xf32, #tpu.memory_space<vmem>>, %arg2: memref<4x4xf32, #tpu.memory_space<vmem>>, %arg3: memref<1x4xf32, #tpu.memory_space<vmem>>, %arg4: memref<4x4xf32, #tpu.memory_space<vmem>>, %arg5: memref<1x4xf32, #tpu.memory_space<vmem>>, %arg6: memref<2x64xf32, #tpu.memory_space<vmem>>) attributes {dimension_semantics = [#tpu.dimension_semantics<parallel>], iteration_bounds = array<i64: 1>, scalar_prefetch = 0 : i64, scratch_operands = 0 : i64, tpu.core_type = #tpu.core_type<tc>, window_params = [{transform_indices = @transform_0, window_bounds = array<i64: 2, 64>}, {pipeline_mode = #tpu.pipeline_mode<synchronous>, transform_indices = @transform_1, window_bounds = array<i64: 4, 4>}, {pipeline_mode = #tpu.pipeline_mode<synchronous>, transform_indices = @transform_2, window_bounds = array<i64: 1, 4>}, {pipeline_mode = #tpu.pipeline_mode<synchronous>, transform_indices = @transform_3, window_bounds = array<i64: 4, 4>}, {pipeline_mode = #tpu.pipeline_mode<synchronous>, transform_indices = @transform_4, window_bounds = array<i64: 1, 4>}, {transform_indices = @transform_5, window_bounds = array<i64: 2, 64>}]} {
    %c0 = arith.constant 0 : index
    %c0_0 = arith.constant 0 : index
    %0 = vector.load %arg1[%c0, %c0_0] : memref<2x64xf32, #tpu.memory_space<vmem>>, vector<2x64xf32>
    %1 = vector.extract_strided_slice %0 {offsets = [0, 0], sizes = [2, 16], strides = [1, 1]} : vector<2x64xf32> to vector<2x16xf32>
    %2 = math.absf %1 : vector<2x16xf32>
    %cst = arith.constant dense<0.000000e+00> : vector<2xf32>
    %3 = vector.multi_reduction <add>, %2, %cst [1] : vector<2x16xf32> to vector<2xf32>
    %4 = vector.shape_cast %3 : vector<2xf32> to vector<2x1xf32>
    %5 = vector.extract_strided_slice %0 {offsets = [0, 16], sizes = [2, 16], strides = [1, 1]} : vector<2x64xf32> to vector<2x16xf32>
    %6 = math.absf %5 : vector<2x16xf32>
    %cst_1 = arith.constant dense<0.000000e+00> : vector<2xf32>
    %7 = vector.multi_reduction <add>, %6, %cst_1 [1] : vector<2x16xf32> to vector<2xf32>
    %8 = vector.shape_cast %7 : vector<2xf32> to vector<2x1xf32>
    %9 = vector.extract_strided_slice %0 {offsets = [0, 32], sizes = [2, 16], strides = [1, 1]} : vector<2x64xf32> to vector<2x16xf32>
    %10 = math.absf %9 : vector<2x16xf32>
    %cst_2 = arith.constant dense<0.000000e+00> : vector<2xf32>
    %11 = vector.multi_reduction <add>, %10, %cst_2 [1] : vector<2x16xf32> to vector<2xf32>
    %12 = vector.shape_cast %11 : vector<2xf32> to vector<2x1xf32>
    %13 = vector.extract_strided_slice %0 {offsets = [0, 48], sizes = [2, 16], strides = [1, 1]} : vector<2x64xf32> to vector<2x16xf32>
    %14 = math.absf %13 : vector<2x16xf32>
    %cst_3 = arith.constant dense<0.000000e+00> : vector<2xf32>
    %15 = vector.multi_reduction <add>, %14, %cst_3 [1] : vector<2x16xf32> to vector<2xf32>
    %16 = vector.shape_cast %15 : vector<2xf32> to vector<2x1xf32>
    %17 = tpu.concatenate %4, %8, %12, %16 in 1 : vector<2x1xf32>, vector<2x1xf32>, vector<2x1xf32>, vector<2x1xf32> -> vector<2x4xf32>
    %cst_4 = arith.constant 6.250000e-02 : f32
    %18 = vector.broadcast %cst_4 : f32 to vector<2x4xf32>
    %19 = arith.mulf %17, %18 : vector<2x4xf32>
    %c0_5 = arith.constant 0 : index
    %c0_6 = arith.constant 0 : index
    %20 = vector.load %arg2[%c0_5, %c0_6] : memref<4x4xf32, #tpu.memory_space<vmem>>, vector<4x4xf32>
    %cst_7 = arith.constant dense<0.000000e+00> : vector<2x4xf32>
    %21 = tpu.matmul %19, %20, %cst_7 {dimension_numbers = #tpu.dot_dimension_numbers<[1], [0], [0], [1], [0, 0, 1, 1], [], []>} : vector<2x4xf32>, vector<4x4xf32>, vector<2x4xf32> -> vector<2x4xf32>
    %c0_8 = arith.constant 0 : index
    %c0_9 = arith.constant 0 : index
    %22 = vector.load %arg3[%c0_8, %c0_9] : memref<1x4xf32, #tpu.memory_space<vmem>>, vector<1x4xf32>
    %23 = vector.broadcast %22 : vector<1x4xf32> to vector<2x4xf32>
    %24 = arith.addf %21, %23 : vector<2x4xf32>
    %cst_10 = arith.constant 0.000000e+00 : f32
    %25 = vector.broadcast %cst_10 : f32 to vector<2x4xf32>
    %26 = arith.maximumf %24, %25 : vector<2x4xf32>
    %c0_11 = arith.constant 0 : index
    %c0_12 = arith.constant 0 : index
    %27 = vector.load %arg4[%c0_11, %c0_12] : memref<4x4xf32, #tpu.memory_space<vmem>>, vector<4x4xf32>
    %cst_13 = arith.constant dense<0.000000e+00> : vector<2x4xf32>
    %28 = tpu.matmul %26, %27, %cst_13 {dimension_numbers = #tpu.dot_dimension_numbers<[1], [0], [0], [1], [0, 0, 1, 1], [], []>} : vector<2x4xf32>, vector<4x4xf32>, vector<2x4xf32> -> vector<2x4xf32>
    %c0_14 = arith.constant 0 : index
    %c0_15 = arith.constant 0 : index
    %29 = vector.load %arg5[%c0_14, %c0_15] : memref<1x4xf32, #tpu.memory_space<vmem>>, vector<1x4xf32>
    %30 = vector.broadcast %29 : vector<1x4xf32> to vector<2x4xf32>
    %31 = arith.addf %28, %30 : vector<2x4xf32>
    %32 = arith.negf %31 : vector<2x4xf32>
    %33 = math.exp %32 : vector<2x4xf32>
    %cst_16 = arith.constant 1.000000e+00 : f32
    %34 = vector.broadcast %cst_16 : f32 to vector<2x4xf32>
    %35 = arith.addf %34, %33 : vector<2x4xf32>
    %36 = arith.divf %34, %35 : vector<2x4xf32>
    %37 = arith.mulf %19, %36 : vector<2x4xf32>
    %38 = vector.extract_strided_slice %37 {offsets = [0, 0], sizes = [2, 1], strides = [1, 1]} : vector<2x4xf32> to vector<2x1xf32>
    %39 = vector.shape_cast %38 : vector<2x1xf32> to vector<2x1xf32>
    %40 = vector.broadcast %39 : vector<2x1xf32> to vector<2x16xf32>
    %41 = vector.extract_strided_slice %37 {offsets = [0, 1], sizes = [2, 1], strides = [1, 1]} : vector<2x4xf32> to vector<2x1xf32>
    %42 = vector.shape_cast %41 : vector<2x1xf32> to vector<2x1xf32>
    %43 = vector.broadcast %42 : vector<2x1xf32> to vector<2x16xf32>
    %44 = vector.extract_strided_slice %37 {offsets = [0, 2], sizes = [2, 1], strides = [1, 1]} : vector<2x4xf32> to vector<2x1xf32>
    %45 = vector.shape_cast %44 : vector<2x1xf32> to vector<2x1xf32>
    %46 = vector.broadcast %45 : vector<2x1xf32> to vector<2x16xf32>
    %47 = vector.extract_strided_slice %37 {offsets = [0, 3], sizes = [2, 1], strides = [1, 1]} : vector<2x4xf32> to vector<2x1xf32>
    %48 = vector.shape_cast %47 : vector<2x1xf32> to vector<2x1xf32>
    %49 = vector.broadcast %48 : vector<2x1xf32> to vector<2x16xf32>
    %50 = tpu.concatenate %40, %43, %46, %49 in 1 : vector<2x16xf32>, vector<2x16xf32>, vector<2x16xf32>, vector<2x16xf32> -> vector<2x64xf32>
    %cst_17 = arith.constant 0.000000e+00 : f32
    %51 = vector.broadcast %cst_17 : f32 to vector<2x64xf32>
    %52 = arith.subf %51, %50 : vector<2x64xf32>
    %53 = arith.maximumf %52, %0 : vector<2x64xf32>
    %54 = arith.minimumf %50, %53 : vector<2x64xf32>
    %55 = arith.subf %0, %54 : vector<2x64xf32>
    %c0_18 = arith.constant 0 : index
    %c0_19 = arith.constant 0 : index
    %56 = vector.load %arg6[%c0_18, %c0_19] : memref<2x64xf32, #tpu.memory_space<vmem>>, vector<2x64xf32>
    tpu.vector_store %arg6[%c0_18, %c0_19], %55 {strides = array<i32>} : memref<2x64xf32, #tpu.memory_space<vmem>>, vector<2x64xf32>,
    return
  }
  func.func @transform_0(%arg0: i32) -> (i32, i32) {
    %c0_i32 = arith.constant 0 : i32
    %c0_i32_0 = arith.constant 0 : i32
    return %arg0, %c0_i32 : i32, i32
  }
  func.func @transform_1(%arg0: i32) -> (i32, i32) {
    %c0_i32 = arith.constant 0 : i32
    %c0_i32_0 = arith.constant 0 : i32
    %c0_i32_1 = arith.constant 0 : i32
    return %c0_i32, %c0_i32_0 : i32, i32
  }
  func.func @transform_2(%arg0: i32) -> (i32, i32) {
    %c0_i32 = arith.constant 0 : i32
    %c0_i32_0 = arith.constant 0 : i32
    %c0_i32_1 = arith.constant 0 : i32
    return %c0_i32, %c0_i32_0 : i32, i32
  }
  func.func @transform_3(%arg0: i32) -> (i32, i32) {
    %c0_i32 = arith.constant 0 : i32
    %c0_i32_0 = arith.constant 0 : i32
    %c0_i32_1 = arith.constant 0 : i32
    return %c0_i32, %c0_i32_0 : i32, i32
  }
  func.func @transform_4(%arg0: i32) -> (i32, i32) {
    %c0_i32 = arith.constant 0 : i32
    %c0_i32_0 = arith.constant 0 : i32
    %c0_i32_1 = arith.constant 0 : i32
    return %c0_i32, %c0_i32_0 : i32, i32
  }
  func.func @transform_5(%arg0: i32) -> (i32, i32) {
    %c0_i32 = arith.constant 0 : i32
    %c0_i32_0 = arith.constant 0 : i32
    return %arg0, %c0_i32 : i32, i32
  }
}

</mosaic_0001>

<llo_original>
// kernel: tpu_custom_call.1
$region0: #{tpu_custom_call.1}
  #allocation0 [shape = 'u32[]', space=smem, size = 0x4, offset = 0x4, fixed_abs, tag = 'smem constant byte address 0x4 - core index']
  #allocation1 [shape = 'u32[144,128]{1,0:T(1,128)}', space=vmem, size = 0x12000, scoped, tag = 'internal scratch']
  %s0 = inlined_call_operand.hbm [shape: f32[2,64], index: 0, kind: input, shape index: {}]
  %s1 = inlined_call_operand.hbm [shape: f32[4,4], index: 1, kind: input, shape index: {}]
  %s2 = inlined_call_operand.vmem [shape: f32[1,4], index: 2, kind: input, shape index: {}]
  %s3 = inlined_call_operand.vmem [shape: f32[4,4], index: 3, kind: input, shape index: {}]
  %s4 = inlined_call_operand.vmem [shape: f32[1,4], index: 4, kind: input, shape index: {}]
  %s5 = inlined_call_operand.hbm [shape: f32[2,64], index: 5, kind: output, shape index: {}]
  %s6 = sld [smem:[#allocation0]]
  $region38: #{tpu_custom_call.1} parent=0
    _
  %s8 = ssub.s32 1, %s6
  %s9 = scalar_select 0, %s8, %s6
  $region1: #{tpu_custom_call.1} parent=0
    #allocation2 [shape = 'u8[1024]{0}', space=vmem, size = 0x400, scoped, tag = 'input window, operand 0, single buffered']
    #allocation3 [shape = 's32[1]{0}', space=sflag, size = 0x4, scoped, tag = 'scoped memory for tpu_custom_call.1']
    #allocation4 [shape = 's32[1]{0}', space=sflag, size = 0x4, scoped, tag = 'scoped memory for tpu_custom_call.1']
    #allocation5 [shape = 'u8[2048]{0}', space=vmem, size = 0x800, scoped, tag = 'input window, operand 1, single buffered']
    #allocation6 [shape = 's32[1]{0}', space=sflag, size = 0x4, scoped, tag = 'scoped memory for tpu_custom_call.1']
    #allocation7 [shape = 'u8[1024]{0}', space=vmem, size = 0x400, scoped, tag = 'output window, operand 0, single buffered']
    %10 = vsyncpa [#allocation3], 0
    %11 = vsyncpa [#allocation6], 0
    %12 = vsyncpa [#allocation4], 0
    // Predicated region
    $region2: #{tpu_custom_call.1} parent=1 // pred_check
      _
    $region3: #{tpu_custom_call.1} parent=1 // pred_check_branch
      %14 = sbr.rel (0) target = $region5
    $region4: #{tpu_custom_call.1} parent=1 // pred_region
      %s16 = ssub.s32 32, 32
      %17 = vsyncadd [#allocation3], %s16
      %s19 = sshll.u32 [#allocation2], 4
      %s20 = int_to_ptr.vmem [resolvable:$true] %s19
      %22 = dma.hbm_to_vmem [thread:$0]  %s0, 32, %s20, [#allocation3]
    $region5: #{tpu_custom_call.1} parent=1 // pred_fallthru
      _
    // Predicated region
    $region6: #{tpu_custom_call.1} parent=1 // pred_check
      _
    $region7: #{tpu_custom_call.1} parent=1 // pred_check_branch
      %24 = sbr.rel (0) target = $region9
    $region8: #{tpu_custom_call.1} parent=1 // pred_region
      %s26 = ssub.s32 64, 64
      %27 = vsyncadd [#allocation6], %s26
      %s29 = sshll.u32 [#allocation5], 4
      %s30 = int_to_ptr.vmem [resolvable:$true] %s29
      %32 = dma.hbm_to_vmem [thread:$0]  %s1, 64, %s30, [#allocation6]
    $region9: #{tpu_custom_call.1} parent=1 // pred_fallthru
      _
    // Predicated region
    $region10: #{tpu_custom_call.1} parent=1 // pred_check
      _
    $region11: #{tpu_custom_call.1} parent=1 // pred_check_branch
      %34 = sbr.rel (0) target = $region13
    $region12: #{tpu_custom_call.1} parent=1 // pred_region
      _
    $region13: #{tpu_custom_call.1} parent=1 // pred_fallthru
      _
    // Predicated region
    $region14: #{tpu_custom_call.1} parent=1 // pred_check
      _
    $region15: #{tpu_custom_call.1} parent=1 // pred_check_branch
      %36 = sbr.rel (0) target = $region17
    $region16: #{tpu_custom_call.1} parent=1 // pred_region
      _
    $region17: #{tpu_custom_call.1} parent=1 // pred_fallthru
      _
    // Predicated region
    $region18: #{tpu_custom_call.1} parent=1 // pred_check
      _
    $region19: #{tpu_custom_call.1} parent=1 // pred_check_branch
      %38 = sbr.rel (0) target = $region21
    $region20: #{tpu_custom_call.1} parent=1 // pred_region
      _
    $region21: #{tpu_custom_call.1} parent=1 // pred_fallthru
      _
    // Predicated region
    $region22: #{tpu_custom_call.1} parent=1 // pred_check
      _
    $region23: #{tpu_custom_call.1} parent=1 // pred_check_branch
      %40 = sbr.rel (0) target = $region25
    $region24: #{tpu_custom_call.1} parent=1 // pred_region
      %41 = dma.done [#allocation3], 32
    $region25: #{tpu_custom_call.1} parent=1 // pred_fallthru
      _
    // Predicated region
    $region26: #{tpu_custom_call.1} parent=1 // pred_check
      _
    $region27: #{tpu_custom_call.1} parent=1 // pred_check_branch
      %43 = sbr.rel (0) target = $region29
    $region28: #{tpu_custom_call.1} parent=1 // pred_region
      %44 = dma.done [#allocation6], 64
    $region29: #{tpu_custom_call.1} parent=1 // pred_fallthru
      _
    %v45 = vld [vmem:[#allocation2] sm:$0x3]
    %v46 = vand.u32 2147483647, %v45
    %vm47 = vcmask 123904
    %v48 = vsel %vm47, %v46, 0.0
    %49 = vadd.xlane.f32.xlu0 %v48
    %v50 = vpop.xlane.xlu0 %49
    %52 = vrot.lane.b32.xlu0 %v46, 112
    %v53 = vpop.permute.xlu0 %52
    %v55 = vsel %vm47, %v53, 0.0
    %56 = vadd.xlane.f32.xlu0 %v55
    %v57 = vpop.xlane.xlu0 %56
    %58 = vrot.lane.b32.xlu0 %v46, 96
    %v59 = vpop.permute.xlu0 %58
    %v61 = vsel %vm47, %v59, 0.0
    %62 = vadd.xlane.f32.xlu0 %v61
    %v63 = vpop.xlane.xlu0 %62
    %64 = vrot.lane.b32.xlu0 %v46, 80
    %v65 = vpop.permute.xlu0 %64
    %v67 = vsel %vm47, %v65, 0.0
    %68 = vadd.xlane.f32.xlu0 %v67
    %v69 = vpop.xlane.xlu0 %68
    %vm70 = vcmask 7168
    %v71 = vsel %vm70, %v50, %v57
    %vm72 = vcmask 15360
    %v73 = vsel %vm72, %v71, %v63
    %vm74 = vcmask 23552
    %v75 = vsel %vm74, %v73, %v69
    %v76 = vmul.f32 %v75, 0.0625
    %v77 = vld [vmem:[#allocation5] sm:$0xf]
    %v78 = vld [vmem:[%s2] sm:$0x1]
    %v80 = vlaneseq
    %v81 = vshrl.u32 %v80, 7
    %v82 = vsub.s32 0, %v81
    %v83 = vrot.slane %v78, %v82
    %vm85 = vcmask 31744
    %v87 = vsel %vm85, %v76, 0
    %vm89 = vcmask 1043456
    %v91 = vsel %vm89, %v77, 0
    %93 = vmatprep.subr.mxu0 0.0
    %94 = vmatpush1.msra.mxu0 %v91
    %95 = vmatprep.subr.mxu0 0.0
    %96 = vmatpush1.msra.mxu0 0.0
    %97 = vmatprep.subr.mxu0 0.0
    %98 = vmatpush1.msra.mxu0 0.0
    %99 = vmatprep.subr.mxu0 0.0
    %100 = vmatpush1.msra.mxu0 0.0
    %101 = vmatprep.subr.mxu0 0.0
    %102 = vmatpush1.msra.mxu0 0.0
    %103 = vmatprep.subr.mxu0 0.0
    %104 = vmatpush1.msra.mxu0 0.0
    %105 = vmatprep.subr.mxu0 0.0
    %106 = vmatpush1.msra.mxu0 0.0
    %107 = vmatprep.subr.mxu0 0.0
    %108 = vmatpush1.msra.mxu0 0.0
    %109 = vmatprep.subr.mxu0 0.0
    %110 = vmatpush1.msra.mxu0 0.0
    %111 = vmatprep.subr.mxu0 0.0
    %112 = vmatpush1.msra.mxu0 0.0
    %113 = vmatprep.subr.mxu0 0.0
    %114 = vmatpush1.msra.mxu0 0.0
    %115 = vmatprep.subr.mxu0 0.0
    %116 = vmatpush1.msra.mxu0 0.0
    %117 = vmatprep.subr.mxu0 0.0
    %118 = vmatpush1.msra.mxu0 0.0
    %119 = vmatprep.subr.mxu0 0.0
    %120 = vmatpush1.msra.mxu0 0.0
    %121 = vmatprep.subr.mxu0 0.0
    %122 = vmatpush1.msra.mxu0 0.0
    %123 = vmatprep.subr.mxu0 0.0
    %124 = vmatpush1.msra.mxu0 0.0
    %125 = vmatprep.subr.mxu0 0.0
    %126 = vmatpush1.msra.mxu0 0.0
    %127 = vmatprep.subr.mxu0 0.0
    %128 = vmatpush1.msra.mxu0 0.0
    %129 = vmatprep.subr.mxu0 0.0
    %130 = vmatpush1.msra.mxu0 0.0
    %131 = vmatprep.subr.mxu0 0.0
    %132 = vmatpush1.msra.mxu0 0.0
    %133 = vmatprep.subr.mxu0 0.0
    %134 = vmatpush1.msra.mxu0 0.0
    %135 = vmatprep.subr.mxu0 0.0
    %136 = vmatpush1.msra.mxu0 0.0
    %137 = vmatprep.subr.mxu0 0.0
    %138 = vmatpush1.msra.mxu0 0.0
    %139 = vmatprep.subr.mxu0 0.0
    %140 = vmatpush1.msra.mxu0 0.0
    %141 = vmatprep.subr.mxu0 0.0
    %142 = vmatpush1.msra.mxu0 0.0
    %143 = vmatprep.subr.mxu0 0.0
    %144 = vmatpush1.msra.mxu0 0.0
    %145 = vmatprep.subr.mxu0 0.0
    %146 = vmatpush1.msra.mxu0 0.0
    %147 = vmatprep.subr.mxu0 0.0
    %148 = vmatpush1.msra.mxu0 0.0
    %149 = vmatprep.subr.mxu0 0.0
    %150 = vmatpush1.msra.mxu0 0.0
    %151 = vmatprep.subr.mxu0 0.0
    %152 = vmatpush1.msra.mxu0 0.0
    %153 = vmatprep.subr.mxu0 0.0
    %154 = vmatpush1.msra.mxu0 0.0
    %155 = vmatprep.subr.mxu0 0.0
    %156 = vmatpush1.msra.mxu0 0.0
    %157 = vmatprep.mubr.f32.mxu0 0.0
    %158 = vmatmul.mubr.f32.gmra.mrb[0].mxu0 %v87
    %v159 = vpop.f32.mrb[0].mxu0
    %v160 = vadd.f32 %v83, %v159
    %v161 = vpop.f32.mrb[0].mxu0
    %162 = vdwg.mxu0
    %v163 = vmax.f32 %v160, 0.0
    %v164 = vld [vmem:[%s3] sm:$0xf]
    %v165 = vld [vmem:[%s4] sm:$0x1]
    %v167 = vlaneseq
    %v168 = vshrl.u32 %v167, 7
    %v169 = vsub.s32 0, %v168
    %v170 = vrot.slane %v165, %v169
    %v173 = vsel %vm85, %v163, 0
    %v176 = vsel %vm89, %v164, 0
    %178 = vmatprep.subr.mxu0 0.0
    %179 = vmatpush1.msra.mxu0 %v176
    %180 = vmatprep.subr.mxu0 0.0
    %181 = vmatpush1.msra.mxu0 0.0
    %182 = vmatprep.subr.mxu0 0.0
    %183 = vmatpush1.msra.mxu0 0.0
    %184 = vmatprep.subr.mxu0 0.0
    %185 = vmatpush1.msra.mxu0 0.0
    %186 = vmatprep.subr.mxu0 0.0
    %187 = vmatpush1.msra.mxu0 0.0
    %188 = vmatprep.subr.mxu0 0.0
    %189 = vmatpush1.msra.mxu0 0.0
    %190 = vmatprep.subr.mxu0 0.0
    %191 = vmatpush1.msra.mxu0 0.0
    %192 = vmatprep.subr.mxu0 0.0
    %193 = vmatpush1.msra.mxu0 0.0
    %194 = vmatprep.subr.mxu0 0.0
    %195 = vmatpush1.msra.mxu0 0.0
    %196 = vmatprep.subr.mxu0 0.0
    %197 = vmatpush1.msra.mxu0 0.0
    %198 = vmatprep.subr.mxu0 0.0
    %199 = vmatpush1.msra.mxu0 0.0
    %200 = vmatprep.subr.mxu0 0.0
    %201 = vmatpush1.msra.mxu0 0.0
    %202 = vmatprep.subr.mxu0 0.0
    %203 = vmatpush1.msra.mxu0 0.0
    %204 = vmatprep.subr.mxu0 0.0
    %205 = vmatpush1.msra.mxu0 0.0
    %206 = vmatprep.subr.mxu0 0.0
    %207 = vmatpush1.msra.mxu0 0.0
    %208 = vmatprep.subr.mxu0 0.0
    %209 = vmatpush1.msra.mxu0 0.0
    %210 = vmatprep.subr.mxu0 0.0
    %211 = vmatpush1.msra.mxu0 0.0
    %212 = vmatprep.subr.mxu0 0.0
    %213 = vmatpush1.msra.mxu0 0.0
    %214 = vmatprep.subr.mxu0 0.0
    %215 = vmatpush1.msra.mxu0 0.0
    %216 = vmatprep.subr.mxu0 0.0
    %217 = vmatpush1.msra.mxu0 0.0
    %218 = vmatprep.subr.mxu0 0.0
    %219 = vmatpush1.msra.mxu0 0.0
    %220 = vmatprep.subr.mxu0 0.0
    %221 = vmatpush1.msra.mxu0 0.0
    %222 = vmatprep.subr.mxu0 0.0
    %223 = vmatpush1.msra.mxu0 0.0
    %224 = vmatprep.subr.mxu0 0.0
    %225 = vmatpush1.msra.mxu0 0.0
    %226 = vmatprep.subr.mxu0 0.0
    %227 = vmatpush1.msra.mxu0 0.0
    %228 = vmatprep.subr.mxu0 0.0
    %229 = vmatpush1.msra.mxu0 0.0
    %230 = vmatprep.subr.mxu0 0.0
    %231 = vmatpush1.msra.mxu0 0.0
    %232 = vmatprep.subr.mxu0 0.0
    %233 = vmatpush1.msra.mxu0 0.0
    %234 = vmatprep.subr.mxu0 0.0
    %235 = vmatpush1.msra.mxu0 0.0
    %236 = vmatprep.subr.mxu0 0.0
    %237 = vmatpush1.msra.mxu0 0.0
    %238 = vmatprep.subr.mxu0 0.0
    %239 = vmatpush1.msra.mxu0 0.0
    %240 = vmatprep.subr.mxu0 0.0
    %241 = vmatpush1.msra.mxu0 0.0
    %242 = vmatprep.mubr.f32.mxu0 0.0
    %243 = vmatmul.mubr.f32.gmra.mrb[0].mxu0 %v173
    %v244 = vpop.f32.mrb[0].mxu0
    %v245 = vadd.f32 %v170, %v244
    %v246 = vpop.f32.mrb[0].mxu0
    %247 = vdwg.mxu0
    %v248 = vxor.u32 %v245, 2147483648
    %v249 = vmul.f32 %v248, 1.442695
    %v250 = vpow.pop %v249
    %v251 = vadd.f32 %v250, 1.0
    %v252 = vrcp.pop %v251
    %v253 = vmul.f32 1.0, %v252
    %v254 = vmul.f32 %v76, %v253
    %256 = vset.pattern.permute.xlu0 0
    %257 = vperm.xlu0 %256, %v254
    %v258 = vpop.permute.xlu0 %257
    %260 = vset.pattern.permute.xlu0 1
    %261 = vperm.xlu0 %260, %v254
    %v262 = vpop.permute.xlu0 %261
    %264 = vset.pattern.permute.xlu0 2
    %265 = vperm.xlu0 %264, %v254
    %v266 = vpop.permute.xlu0 %265
    %268 = vset.pattern.permute.xlu0 3
    %269 = vperm.xlu0 %268, %v254
    %v270 = vpop.permute.xlu0 %269
    %vm272 = vcmask 130048
    %v273 = vsel %vm272, %v258, %v262
    %vm274 = vcmask 261120
    %v275 = vsel %vm274, %v273, %v266
    %vm276 = vcmask 392192
    %v277 = vsel %vm276, %v275, %v270
    %v278 = vsub.f32 0.0, %v277
    %v279 = vmax.f32 %v278, %v45
    %v280 = vmin.f32 %v277, %v279
    %v281 = vsub.f32 %v45, %v280
    %vm282 = vcmask 517120
    %283 = vst.msk [vmem:[#allocation7] sm:$0x3] %vm282, %v281
    // Predicated region
    $region30: #{tpu_custom_call.1} parent=1 // pred_check
      _
    $region31: #{tpu_custom_call.1} parent=1 // pred_check_branch
      %285 = sbr.rel (0) target = $region33
    $region32: #{tpu_custom_call.1} parent=1 // pred_region
      %s287 = ssub.s32 32, 32
      %288 = vsyncadd [#allocation4], %s287
      %s290 = sshll.u32 [#allocation7], 4
      %s291 = int_to_ptr.vmem [resolvable:$true] %s290
      %293 = dma.vmem_to_hbm [thread:$0]  %s291, 32, %s5, [#allocation4]
    $region33: #{tpu_custom_call.1} parent=1 // pred_fallthru
      _
    // Predicated region
    $region34: #{tpu_custom_call.1} parent=1 // pred_check
      _
    $region35: #{tpu_custom_call.1} parent=1 // pred_check_branch
      %295 = sbr.rel (0) target = $region37
    $region36: #{tpu_custom_call.1} parent=1 // pred_region
      %296 = dma.done [#allocation4], 32
    $region37: #{tpu_custom_call.1} parent=1 // pred_fallthru
      _
    %297 = vsyncpa [#allocation3], 1
    %298 = vsyncpa [#allocation6], 1
    %299 = vsyncpa [#allocation4], 1

</llo_original>
